<compile_context>
chip_gen: v5e
topology: v5e:2x2
jax: 0.10.0
libtpu: 0.0.40
codegen_flags: <defaults>
</compile_context>

<pallas_src>
import functools

import numpy as np

import jax
import jax.numpy as jnp
from jax.experimental import pallas as pl
from jax.experimental.pallas import tpu as pltpu


def _round_up(v, m):
    return (v + m - 1) // m * m


def conv3x3_kernel(x_ref, w_ref, b_ref, o_ref, *, wp, cin, group_dy):
    """3x3 conv on one (image, row-tile) block.

    x_ref: (Cin, TLp)     padded row tile (TH+2 padded rows of width wp=W+2),
                          flattened row-major, lane-padded to TLp (mult of 128).
    w_ref: (Cout, 9*Cin)  weights, columns ordered (dy, dx, cin).
    b_ref: (Cout, 1)      bias (f32).
    o_ref: (Cout, TLo)    output rows of this tile in padded-width flat coords
                          (the wrapper drops the 2 dead columns per row).

    Tap (dy, dx) of output flat position o reads input flat position
    o + dy*wp + dx, i.e. the input rolled by -(dy*wp + dx).  Since
    TLp >= (TH+2)*wp, the circular wrap of pltpu.roll only lands at output
    positions o >= TLp - (2*wp + 2), which are never in the kept range
    o = i*wp + j (i < TH, j < W).
    """
    x = x_ref[...]                                     # (Cin, TLp)
    tlp = x.shape[1]
    w = w_ref[...]                                     # (Cout, 9*Cin)
    cout = w.shape[0]

    acc = jnp.zeros((cout, tlp), jnp.float32)
    if group_dy:
        # 3 accumulating matmuls with K = 3*Cin (better MXU fill when Cin is
        # small); transient group slab is only 3x the input tile.
        for dy in range(3):
            taps = []
            for dx in range(3):
                off = dy * wp + dx
                taps.append(pltpu.roll(x, tlp - off, 1) if off else x)
            slab = jnp.concatenate(taps, axis=0)       # (3*Cin, TLp)
            w_dy = w[:, 3 * dy * cin:3 * (dy + 1) * cin]
            acc = acc + jnp.dot(w_dy, slab,
                                preferred_element_type=jnp.float32)
    else:
        # Split-K: 9 accumulating matmuls with K = Cin — no im2col slab at all.
        # Preferred form at production channel counts (and on v7x's MRB).
        for dy in range(3):
            for dx in range(3):
                off = dy * wp + dx
                xs = pltpu.roll(x, tlp - off, 1) if off else x
                k = 3 * dy + dx
                w_k = w[:, k * cin:(k + 1) * cin]
                acc = acc + jnp.dot(w_k, xs,
                                    preferred_element_type=jnp.float32)

    out_lanes = o_ref.shape[1]                         # 128-aligned, <= TLp
    o_ref[...] = (acc[:, :out_lanes] + b_ref[...]).astype(o_ref.dtype)


def conv3x3_pallas(x_nchw, weight_oihw, bias, *, use_refl=True,
                   compute_dtype=None, row_tile=None, dy_grouping=None):
    """Matches Conv3x3.forward: pad by 1 (reflect or zero) then 3x3 conv."""
    N, Cin, H, W = x_nchw.shape
    Cout = weight_oihw.shape[0]
    Wp = W + 2
    out_dtype = x_nchw.dtype
    in_dtype = compute_dtype if compute_dtype is not None else x_nchw.dtype
    itemsize = jnp.dtype(in_dtype).itemsize

    # ---- row tile (2-row halo), sized so per-step blocks stay well under
    # v7x's 64 MiB VMEM (v5e/v6e could go ~2x larger). ----
    if row_tile is None:
        per_row = (2 * Cin * Wp + 2 * Cout * Wp) * itemsize + Cout * Wp * 4
        budget = 24 * 1024 * 1024
        row_tile = max(8, min(H, budget // max(per_row, 1)))
    TH = int(min(int(row_tile), H))
    n_tiles = int(pl.cdiv(H, TH))
    Hpad = n_tiles * TH

    TLp = _round_up((TH + 2) * Wp, 128)       # input tile lane width
    TLo = _round_up(TH * Wp, 128)             # output tile lane width
    # Max tap shift is 2*Wp+2; kept outputs never read past / wrap around TLp.
    assert (TH + 1) * Wp + (W + 1) < TLp
    assert TLo <= TLp

    if dy_grouping is None:
        dy_grouping = Cin < 128               # small K: group 3 dx taps per dot

    # ---- wrapper glue: reflect/zero pad, halo'd row tiles, lane pad. ----
    # TODO(synk): fold this into the kernel (pl.ANY + manual halo DMA with
    # in-kernel edge reflection) to remove the extra HBM input pass.
    pad_mode = "reflect" if use_refl else "constant"
    xpad = jnp.pad(x_nchw, ((0, 0), (0, 0), (1, 1), (1, 1)), mode=pad_mode)
    if Hpad > H:                              # ragged last tile: rows dropped later
        xpad = jnp.pad(xpad, ((0, 0), (0, 0), (0, Hpad - H), (0, 0)))
    row_idx = (np.arange(n_tiles)[:, None] * TH
               + np.arange(TH + 2)[None, :])              # (n_tiles, TH+2)
    xtiles = xpad[:, :, row_idx, :]                       # (N, Cin, n_tiles, TH+2, Wp)
    xtiles = xtiles.reshape(N, Cin, n_tiles, (TH + 2) * Wp)
    xtiles = jnp.pad(xtiles, ((0, 0), (0, 0), (0, 0),
                              (0, TLp - (TH + 2) * Wp)))
    xtiles = xtiles.reshape(N, Cin, n_tiles * TLp).astype(in_dtype)

    # (O, I, 3, 3) -> (O, 3, 3, I) -> (O, 9*I); columns ordered (dy, dx, cin).
    w_slab = jnp.transpose(weight_oihw, (0, 2, 3, 1)).reshape(Cout, 9 * Cin)
    w_slab = w_slab.astype(in_dtype)
    b2d = bias.reshape(Cout, 1).astype(jnp.float32)

    kernel = functools.partial(conv3x3_kernel, wp=Wp, cin=Cin,
                               group_dy=bool(dy_grouping))

    # Explicit scoped-VMEM budget: double-buffered in/out blocks + weights +
    # f32 accumulator + slack (capped below physical VMEM on all generations).
    in_block = Cin * TLp * itemsize
    out_block = Cout * TLo * jnp.dtype(out_dtype).itemsize
    need = (2 * (in_block + out_block) + 9 * Cout * Cin * itemsize
            + Cout * TLp * 4 + (2 << 20))
    vmem_limit = int(min(max(need, 32 << 20), 64 << 20))

    cost = pl.CostEstimate(
        flops=2 * N * n_tiles * TH * W * Cout * 9 * Cin,
        transcendentals=0,
        bytes_accessed=int(xtiles.size) * itemsize
        + 9 * Cout * Cin * itemsize + Cout * 4
        + N * Cout * n_tiles * TLo * jnp.dtype(out_dtype).itemsize)

    out_flat = pl.pallas_call(
        kernel,
        out_shape=jax.ShapeDtypeStruct((N, Cout, n_tiles * TLo), out_dtype),
        grid_spec=pltpu.PrefetchScalarGridSpec(
            num_scalar_prefetch=0,
            grid=(N, n_tiles),
            in_specs=[
                # one (image, row-tile) input block per step; batch squeezed
                pl.BlockSpec((pl.Squeezed(), Cin, TLp),
                             lambda n, t: (n, 0, t)),
                # constant-index blocks: fetched once, kept resident
                pl.BlockSpec((Cout, 9 * Cin), lambda n, t: (0, 0)),
                pl.BlockSpec((Cout, 1), lambda n, t: (0, 0)),
            ],
            out_specs=pl.BlockSpec((pl.Squeezed(), Cout, TLo),
                                   lambda n, t: (n, 0, t)),
        ),
        compiler_params=pltpu.CompilerParams(
            dimension_semantics=("parallel", "parallel"),
            vmem_limit_bytes=vmem_limit),
        cost_estimate=cost,
    )(xtiles, w_slab, b2d)

    # Drop lane padding and the 2 dead columns per row; un-tile the rows.
    out = out_flat.reshape(N, Cout, n_tiles, TLo)[:, :, :, :TH * Wp]
    out = out.reshape(N, Cout, Hpad, Wp)[:, :, :H, :W]
    return out


def reference_conv3x3(x_nchw, weight_oihw, bias, *, use_refl=True):
    """Pure-JAX reference (lax.conv) for correctness checking."""
    pad_mode = "reflect" if use_refl else "constant"
    x_pad = jnp.pad(x_nchw, ((0, 0), (0, 0), (1, 1), (1, 1)), mode=pad_mode)
    out = jax.lax.conv_general_dilated(
        x_pad, weight_oihw, window_strides=(1, 1), padding="VALID",
        dimension_numbers=("NCHW", "OIHW", "NCHW"))
    return out + bias[None, :, None, None]


if __name__ == "__main__":
    # Small shapes consistent with the module: batch=2, in_channels=4,
    # out_channels=8, spatial 16x16.  row_tile=8 exercises the halo'd row
    # tiling (2 tiles per image -> 4 parallel grid steps).
    N, Cin, Cout, H, W = 2, 4, 8, 16, 16

    key = jax.random.PRNGKey(0)
    kx, kw, kb = jax.random.split(key, 3)

    x = jax.random.normal(kx, (N, Cin, H, W), dtype=jnp.float32)
    fan_in = Cin * 3 * 3
    bound = 1.0 / float(np.sqrt(fan_in))
    weight = jax.random.uniform(kw, (Cout, Cin, 3, 3), dtype=jnp.float32,
                                minval=-bound, maxval=bound)
    bias = jax.random.uniform(kb, (Cout,), dtype=jnp.float32,
                              minval=-bound, maxval=bound)

    # f32, reflection pad (dy-grouped matmuls, auto for small Cin).
    out = jax.block_until_ready(
        conv3x3_pallas(x, weight, bias, use_refl=True, row_tile=8))
    ref = reference_conv3x3(x, weight, bias, use_refl=True)
    assert out.shape == (N, Cout, H, W), out.shape
    assert jnp.allclose(out, ref, atol=1e-4, rtol=1e-4), "reflect mismatch"

    # f32, zero pad.
    out_z = jax.block_until_ready(
        conv3x3_pallas(x, weight, bias, use_refl=False, row_tile=8))
    ref_z = reference_conv3x3(x, weight, bias, use_refl=False)
    assert jnp.allclose(out_z, ref_z, atol=1e-4, rtol=1e-4), "zero-pad mismatch"

    # bf16 inputs/weights (split-K per-tap path), f32 accumulation + bias.
    out_bf = jax.block_until_ready(conv3x3_pallas(
        x, weight, bias, use_refl=True, row_tile=8,
        compute_dtype=jnp.bfloat16, dy_grouping=False))
    assert jnp.allclose(out_bf, ref, atol=5e-2, rtol=5e-2), "bf16 mismatch"

    print("KERNEL_OK")
</pallas_src>

<mosaic_0001>
module attributes {stable_mosaic.version = 11 : i64} {
  func.func @conv3x3_kernel(%arg0: i32, %arg1: i32, %arg2: memref<1x4x256xf32, #tpu.memory_space<vmem>>, %arg3: memref<8x36xf32, #tpu.memory_space<vmem>>, %arg4: memref<8x1xf32, #tpu.memory_space<vmem>>, %arg5: memref<1x8x256xf32, #tpu.memory_space<vmem>>) attributes {dimension_semantics = [#tpu.dimension_semantics<parallel>, #tpu.dimension_semantics<parallel>], iteration_bounds = array<i64: 2, 2>, scalar_prefetch = 0 : i64, scratch_operands = 0 : i64, tpu.core_type = #tpu.core_type<tc>, window_params = [{transform_indices = @transform_0, window_bounds = array<i64: 1, 4, 256>}, {pipeline_mode = #tpu.pipeline_mode<synchronous>, transform_indices = @transform_1, window_bounds = array<i64: 8, 36>}, {pipeline_mode = #tpu.pipeline_mode<synchronous>, transform_indices = @transform_2, window_bounds = array<i64: 8, 1>}, {transform_indices = @transform_3, window_bounds = array<i64: 1, 8, 256>}]} {
    %c0 = arith.constant 0 : index
    %c0_0 = arith.constant 0 : index
    %c0_1 = arith.constant 0 : index
    %0 = vector.load %arg2[%c0, %c0_0, %c0_1] : memref<1x4x256xf32, #tpu.memory_space<vmem>>, vector<1x4x256xf32>
    %1 = vector.shape_cast %0 : vector<1x4x256xf32> to vector<4x256xf32>
    %c0_2 = arith.constant 0 : index
    %c0_3 = arith.constant 0 : index
    %2 = vector.load %arg3[%c0_2, %c0_3] : memref<8x36xf32, #tpu.memory_space<vmem>>, vector<8x36xf32>
    %cst = arith.constant 0.000000e+00 : f32
    %3 = vector.broadcast %cst : f32 to vector<8x256xf32>
    %c255_i32 = arith.constant 255 : i32
    %4 = tpu.dynamic_rotate %1 by %c255_i32 dim 1 : vector<4x256xf32>, i32 -> vector<4x256xf32>
    %c254_i32 = arith.constant 254 : i32
    %5 = tpu.dynamic_rotate %1 by %c254_i32 dim 1 : vector<4x256xf32>, i32 -> vector<4x256xf32>
    %6 = tpu.concatenate %1, %4, %5 in 0 : vector<4x256xf32>, vector<4x256xf32>, vector<4x256xf32> -> vector<12x256xf32>
    %7 = vector.extract_strided_slice %2 {offsets = [0, 0], sizes = [8, 12], strides = [1, 1]} : vector<8x36xf32> to vector<8x12xf32>
    %cst_4 = arith.constant dense<0.000000e+00> : vector<8x256xf32>
    %8 = tpu.matmul %7, %6, %cst_4 {dimension_numbers = #tpu.dot_dimension_numbers<[1], [0], [0], [1], [0, 0, 1, 1], [], []>} : vector<8x12xf32>, vector<12x256xf32>, vector<8x256xf32> -> vector<8x256xf32>
    %9 = arith.addf %3, %8 : vector<8x256xf32>
    %c238_i32 = arith.constant 238 : i32
    %10 = tpu.dynamic_rotate %1 by %c238_i32 dim 1 : vector<4x256xf32>, i32 -> vector<4x256xf32>
    %c237_i32 = arith.constant 237 : i32
    %11 = tpu.dynamic_rotate %1 by %c237_i32 dim 1 : vector<4x256xf32>, i32 -> vector<4x256xf32>
    %c236_i32 = arith.constant 236 : i32
    %12 = tpu.dynamic_rotate %1 by %c236_i32 dim 1 : vector<4x256xf32>, i32 -> vector<4x256xf32>
    %13 = tpu.concatenate %10, %11, %12 in 0 : vector<4x256xf32>, vector<4x256xf32>, vector<4x256xf32> -> vector<12x256xf32>
    %14 = vector.extract_strided_slice %2 {offsets = [0, 12], sizes = [8, 12], strides = [1, 1]} : vector<8x36xf32> to vector<8x12xf32>
    %cst_5 = arith.constant dense<0.000000e+00> : vector<8x256xf32>
    %15 = tpu.matmul %14, %13, %cst_5 {dimension_numbers = #tpu.dot_dimension_numbers<[1], [0], [0], [1], [0, 0, 1, 1], [], []>} : vector<8x12xf32>, vector<12x256xf32>, vector<8x256xf32> -> vector<8x256xf32>
    %16 = arith.addf %9, %15 : vector<8x256xf32>
    %c220_i32 = arith.constant 220 : i32
    %17 = tpu.dynamic_rotate %1 by %c220_i32 dim 1 : vector<4x256xf32>, i32 -> vector<4x256xf32>
    %c219_i32 = arith.constant 219 : i32
    %18 = tpu.dynamic_rotate %1 by %c219_i32 dim 1 : vector<4x256xf32>, i32 -> vector<4x256xf32>
    %c218_i32 = arith.constant 218 : i32
    %19 = tpu.dynamic_rotate %1 by %c218_i32 dim 1 : vector<4x256xf32>, i32 -> vector<4x256xf32>
    %20 = tpu.concatenate %17, %18, %19 in 0 : vector<4x256xf32>, vector<4x256xf32>, vector<4x256xf32> -> vector<12x256xf32>
    %21 = vector.extract_strided_slice %2 {offsets = [0, 24], sizes = [8, 12], strides = [1, 1]} : vector<8x36xf32> to vector<8x12xf32>
    %cst_6 = arith.constant dense<0.000000e+00> : vector<8x256xf32>
    %22 = tpu.matmul %21, %20, %cst_6 {dimension_numbers = #tpu.dot_dimension_numbers<[1], [0], [0], [1], [0, 0, 1, 1], [], []>} : vector<8x12xf32>, vector<12x256xf32>, vector<8x256xf32> -> vector<8x256xf32>
    %23 = arith.addf %16, %22 : vector<8x256xf32>
    %c0_7 = arith.constant 0 : index
    %c0_8 = arith.constant 0 : index
    %24 = vector.load %arg4[%c0_7, %c0_8] : memref<8x1xf32, #tpu.memory_space<vmem>>, vector<8x1xf32>
    %25 = vector.broadcast %24 : vector<8x1xf32> to vector<8x256xf32>
    %26 = arith.addf %23, %25 : vector<8x256xf32>
    %c0_9 = arith.constant 0 : index
    %c0_10 = arith.constant 0 : index
    %c0_11 = arith.constant 0 : index
    %27 = vector.load %arg5[%c0_9, %c0_10, %c0_11] : memref<1x8x256xf32, #tpu.memory_space<vmem>>, vector<1x8x256xf32>
    %28 = vector.shape_cast %27 : vector<1x8x256xf32> to vector<8x256xf32>
    %29 = vector.shape_cast %26 : vector<8x256xf32> to vector<1x8x256xf32>
    tpu.vector_store %arg5[%c0_9, %c0_10, %c0_11], %29 {strides = array<i32>} : memref<1x8x256xf32, #tpu.memory_space<vmem>>, vector<1x8x256xf32>,
    return
  }
  func.func @transform_0(%arg0: i32, %arg1: i32) -> (i32, i32, i32) {
    %c0_i32 = arith.constant 0 : i32
    %c0_i32_0 = arith.constant 0 : i32
    return %arg0, %c0_i32, %arg1 : i32, i32, i32
  }
  func.func @transform_1(%arg0: i32, %arg1: i32) -> (i32, i32) {
    %c0_i32 = arith.constant 0 : i32
    %c0_i32_0 = arith.constant 0 : i32
    %c0_i32_1 = arith.constant 0 : i32
    return %c0_i32, %c0_i32_0 : i32, i32
  }
  func.func @transform_2(%arg0: i32, %arg1: i32) -> (i32, i32) {
    %c0_i32 = arith.constant 0 : i32
    %c0_i32_0 = arith.constant 0 : i32
    %c0_i32_1 = arith.constant 0 : i32
    return %c0_i32, %c0_i32_0 : i32, i32
  }
  func.func @transform_3(%arg0: i32, %arg1: i32) -> (i32, i32, i32) {
    %c0_i32 = arith.constant 0 : i32
    %c0_i32_0 = arith.constant 0 : i32
    return %arg0, %c0_i32, %arg1 : i32, i32, i32
  }
}

</mosaic_0001>

<llo_original>
// kernel: tpu_custom_call.1
$region0: #{tpu_custom_call.1}
  #allocation0 [shape = 'u32[]', space=smem, size = 0x4, offset = 0x4, fixed_abs, tag = 'smem constant byte address 0x4 - core index']
  #allocation1 [shape = 'u32[72,128]{1,0:T(1,128)}', space=vmem, size = 0x9000, scoped, tag = 'internal scratch']
  %s0 = inlined_call_operand.hbm [shape: f32[2,4,512], index: 0, kind: input, shape index: {}]
  %s1 = inlined_call_operand.vmem [shape: f32[8,36], index: 1, kind: input, shape index: {}]
  %s2 = inlined_call_operand.vmem [shape: f32[8,1], index: 2, kind: input, shape index: {}]
  %s3 = inlined_call_operand.hbm [shape: f32[2,8,512], index: 3, kind: output, shape index: {}]
  %s4 = sld [smem:[#allocation0]]
  $region49: #{tpu_custom_call.1} parent=0
    _
  %s6 = ssub.s32 1, %s4
  %s7 = scalar_select 0, %s6, %s4
  $region1: #{tpu_custom_call.1} parent=0
    #allocation2 [shape = 'u8[8192]{0}', space=vmem, size = 0x2000, scoped, tag = 'input window, operand 0']
    #allocation3 [shape = 's32[2]{0}', space=sflag, size = 0x8, scoped, tag = 'scoped memory for tpu_custom_call.1']
    #allocation4 [shape = 's32[2]{0}', space=sflag, size = 0x8, scoped, tag = 'scoped memory for tpu_custom_call.1']
    #allocation5 [shape = 'u8[16384]{0}', space=vmem, size = 0x4000, scoped, tag = 'output window, operand 0']
    %8 = vsyncpa [#allocation3], 0
    %s9 = scalar_lea.sflag [#allocation3], 1
    %10 = vsyncpa %s9, 0
    %11 = vsyncpa [#allocation4], 0
    %s12 = scalar_lea.sflag [#allocation4], 1
    %13 = vsyncpa %s12, 0
    loop: start=0, step=1, limit=6
    $region2: #{tpu_custom_call.1} parent=1 // loop_pre_header
      _
    $region3: #{tpu_custom_call.1} parent=1 // loop_header
      %s15 = sphi 0, %s19
      %p16 = scmp.ge.s32.totalorder %s15, 6
      %s22 = sphi 0, %s34
      %s23 = sphi 0, %s30
      %s24 = sphi 0, %s22
      %s25 = sphi 0, %s23
      %s26 = sphi 0, %s24
      %s27 = sphi 0, %s25
      %s39 = sphi 0, %s41
      %s42 = sphi 0, %s39
      %s43 = sphi 0, %s42
      %s59 = sphi 0, %s43
      %s63 = sphi 0, %s63
      %s65 = sphi 0, %s63
      %s66 = sphi 0, %s65
      %s80 = sphi 0, %s66
      %s84 = sphi 0, %s84
      %s86 = sphi 0, %s84
      %s87 = sphi 0, %s86
      %s101 = sphi 0, %s87
      %s109 = sphi 0, %s111
      %s112 = sphi 0, %s109
      %s113 = sphi 0, %s112
      %s129 = sphi 0, %s113
    $region4: #{tpu_custom_call.1} parent=1 // loop_header_branch
      %18 = sbr.rel (%p16) target = $region8
    $region5: #{tpu_custom_call.1} parent=1 // loop_body
      %s20 = ssub.s32 %s15, 1
      %s21 = ssub.s32 %s15, 2
      %s28 = sadd.s32 1, %s23
      %p29 = scmp.ge.s32.totalorder %s28, 2
      %s30 = scalar_select %p29, 0, %s28
      %s31 = sadd.s32 1, %s22
      %s32 = scalar_select %p29, %s31, %s22
      %p33 = scmp.ge.s32.totalorder %s32, 2
      %s34 = scalar_select %p33, 0, %s32
      %s35 = ssub.s32 %s22, %s34
      %s36 = ssub.s32 %s23, %s30
      %s37 = sor.u32 %s35, %s36
      %p38 = scmp.eq.s32.totalorder %s37, 0
      %s40 = sadd.s32 %s39, 1
      %s41 = scalar_select %p38, %s39, %s40
      %p44 = pneg %p38
      %p45 = scmp.eq.s32.totalorder %s15, 3
      %p46 = por %p44, %p45
      %p47 = scmp.ne.s32.totalorder %s39, %s42
      %p48 = scmp.eq.s32.totalorder %s15, 0
      %p49 = por %p47, %p48
      %p50 = scmp.ne.s32.totalorder %s39, %s42
      %p51 = scmp.eq.s32.totalorder %s20, 3
      %p52 = por %p50, %p51
      %p53 = scmp.ne.s32.totalorder %s42, %s43
      %p54 = scmp.eq.s32.totalorder %s20, 0
      %p55 = por %p53, %p54
      %p56 = scmp.ne.s32.totalorder %s42, %s43
      %p57 = scmp.eq.s32.totalorder %s21, 3
      %p58 = por %p56, %p57
      %p60 = scmp.ne.s32.totalorder %s43, %s59
      %p61 = scmp.eq.s32.totalorder %s21, 0
      %p62 = por %p60, %p61
      %s64 = sadd.s32 %s63, 1
      %p67 = scmp.eq.s32.totalorder %s15, 3
      %p68 = scmp.ne.s32.totalorder %s63, %s65
      %p69 = scmp.eq.s32.totalorder %s15, 0
      %p70 = por %p68, %p69
      %p71 = scmp.ne.s32.totalorder %s63, %s65
      %p72 = scmp.eq.s32.totalorder %s20, 3
      %p73 = por %p71, %p72
      %p74 = scmp.ne.s32.totalorder %s65, %s66
      %p75 = scmp.eq.s32.totalorder %s20, 0
      %p76 = por %p74, %p75
      %p77 = scmp.ne.s32.totalorder %s65, %s66
      %p78 = scmp.eq.s32.totalorder %s21, 3
      %p79 = por %p77, %p78
      %p81 = scmp.ne.s32.totalorder %s66, %s80
      %p82 = scmp.eq.s32.totalorder %s21, 0
      %p83 = por %p81, %p82
      %s85 = sadd.s32 %s84, 1
      %p88 = scmp.eq.s32.totalorder %s15, 3
      %p89 = scmp.ne.s32.totalorder %s84, %s86
      %p90 = scmp.eq.s32.totalorder %s15, 0
      %p91 = por %p89, %p90
      %p92 = scmp.ne.s32.totalorder %s84, %s86
      %p93 = scmp.eq.s32.totalorder %s20, 3
      %p94 = por %p92, %p93
      %p95 = scmp.ne.s32.totalorder %s86, %s87
      %p96 = scmp.eq.s32.totalorder %s20, 0
      %p97 = por %p95, %p96
      %p98 = scmp.ne.s32.totalorder %s86, %s87
      %p99 = scmp.eq.s32.totalorder %s21, 3
      %p100 = por %p98, %p99
      %p102 = scmp.ne.s32.totalorder %s87, %s101
      %p103 = scmp.eq.s32.totalorder %s21, 0
      %p104 = por %p102, %p103
      %s105 = ssub.s32 %s22, %s34
      %s106 = ssub.s32 %s23, %s30
      %s107 = sor.u32 %s105, %s106
      %p108 = scmp.eq.s32.totalorder %s107, 0
      %s110 = sadd.s32 %s109, 1
      %s111 = scalar_select %p108, %s109, %s110
      %p114 = pneg %p108
      %p115 = scmp.eq.s32.totalorder %s15, 3
      %p116 = por %p114, %p115
      %p117 = scmp.ne.s32.totalorder %s109, %s112
      %p118 = scmp.eq.s32.totalorder %s15, 0
      %p119 = por %p117, %p118
      %p120 = scmp.ne.s32.totalorder %s109, %s112
      %p121 = scmp.eq.s32.totalorder %s20, 3
      %p122 = por %p120, %p121
      %p123 = scmp.ne.s32.totalorder %s112, %s113
      %p124 = scmp.eq.s32.totalorder %s20, 0
      %p125 = por %p123, %p124
      %p126 = scmp.ne.s32.totalorder %s112, %s113
      %p127 = scmp.eq.s32.totalorder %s21, 3
      %p128 = por %p126, %p127
      %p130 = scmp.ne.s32.totalorder %s113, %s129
      %p131 = scmp.eq.s32.totalorder %s21, 0
      %p132 = por %p130, %p131
      %p133 = scmp.le.s32.totalorder 1, %s15
      %p134 = scmp.lt.s32.totalorder %s15, 5
      %p135 = pnand %p133, %p134
      %p136 = pneg %p135
      // Predicated region
      $region9: #{tpu_custom_call.1} parent=5 // pred_check
        _
      $region10: #{tpu_custom_call.1} parent=5 // pred_check_branch
        %138 = sbr.rel (%p135) target = $region12
      $region11: #{tpu_custom_call.1} parent=5 // pred_region
        %s139 = ssub.s32 %s15, 1
        // Predicated region
        $region13: #{tpu_custom_call.1} parent=11 // pred_check
          %p140 = pneg %p76
        $region14: #{tpu_custom_call.1} parent=11 // pred_check_branch
          %142 = sbr.rel (%p140) target = $region16
        $region15: #{tpu_custom_call.1} parent=11 // pred_region
          _
        $region16: #{tpu_custom_call.1} parent=11 // pred_fallthru
          _
        // Predicated region
        $region17: #{tpu_custom_call.1} parent=11 // pred_check
          %p143 = pneg %p97
        $region18: #{tpu_custom_call.1} parent=11 // pred_check_branch
          %145 = sbr.rel (%p143) target = $region20
        $region19: #{tpu_custom_call.1} parent=11 // pred_region
          _
        $region20: #{tpu_custom_call.1} parent=11 // pred_fallthru
          _
      $region12: #{tpu_custom_call.1} parent=5 // pred_fallthru
        _
      %p146 = scmp.lt.s32.totalorder %s15, 4
      // Predicated region
      $region21: #{tpu_custom_call.1} parent=5 // pred_check
        %p147 = pneg %p146
      $region22: #{tpu_custom_call.1} parent=5 // pred_check_branch
        %149 = sbr.rel (%p147) target = $region24
      $region23: #{tpu_custom_call.1} parent=5 // pred_region
        // Predicated region
        $region25: #{tpu_custom_call.1} parent=23 // pred_check
          %p150 = pneg %p49
        $region26: #{tpu_custom_call.1} parent=23 // pred_check_branch
          %152 = sbr.rel (%p150) target = $region28
        $region27: #{tpu_custom_call.1} parent=23 // pred_region
          %s153 = sand.u32 %s39, 1
          %s154 = scalar_lea.sflag [#allocation3], %s153
          %s155 = sand.u32 %s39, 1
          %s156 = smul.addr %s155, 8
          %s157 = scalar_lea.vmem [#allocation2], %s156
          %s158 = smul.u32 2, %s23
          %160 = vsyncadd %s154, 0
          %s161 = smul.addr %s22, 4
          %s162 = sadd.s32 %s158, %s161
          %s163 = smul.addr %s162, 4
          %s164 = scalar_lea.hbm %s0, %s163
          %s166 = sshll.u32 %s164, 4
          %s167 = int_to_ptr.hbm [resolvable:$true] %s166
          %s168 = sshll.u32 %s157, 4
          %s169 = int_to_ptr.vmem [resolvable:$true] %s168
          %171 = dma.hbm_to_vmem [thread:$0]  %s167, 128, %s169, %s154
        $region28: #{tpu_custom_call.1} parent=23 // pred_fallthru
          _
      $region24: #{tpu_custom_call.1} parent=5 // pred_fallthru
        _
      %p172 = scmp.le.s32.totalorder 1, %s15
      %p173 = scmp.lt.s32.totalorder %s15, 5
      %p174 = pnand %p172, %p173
      %p175 = pneg %p174
      // Predicated region
      $region29: #{tpu_custom_call.1} parent=5 // pred_check
        _
      $region30: #{tpu_custom_call.1} parent=5 // pred_check_branch
        %177 = sbr.rel (%p174) target = $region32
      $region31: #{tpu_custom_call.1} parent=5 // pred_region
        %s178 = ssub.s32 %s15, 1
        %s179 = sand.u32 %s42, 1
        %s180 = scalar_lea.sflag [#allocation3], %s179
        %s181 = sand.u32 %s42, 1
        %s182 = smul.addr %s181, 8
        %s183 = scalar_lea.vmem [#allocation2], %s182
        // Predicated region
        $region33: #{tpu_custom_call.1} parent=31 // pred_check
          %p184 = pneg %p55
        $region34: #{tpu_custom_call.1} parent=31 // pred_check_branch
          %186 = sbr.rel (%p184) target = $region36
        $region35: #{tpu_custom_call.1} parent=31 // pred_region
          %188 = dma.done %s180, 128
        $region36: #{tpu_custom_call.1} parent=31 // pred_fallthru
          _
        %s189 = sand.u32 %s42, 1
        %s190 = scalar_lea.sflag [#allocation3], %s189
        %s191 = sand.u32 %s42, 1
        %s192 = smul.addr %s191, 8
        %s193 = scalar_lea.vmem [#allocation2], %s192
        %p194 = pneg %p55
        %p195 = pneg %p52
        %p196 = pneg %p76
        %p197 = pneg %p73
        %p198 = pneg %p97
        %p199 = pneg %p94
        %p200 = pneg %p125
        %p201 = pneg %p122
        %s202 = sand.u32 %s112, 1
        %s203 = scalar_lea.sflag [#allocation4], %s202
        %s204 = sand.u32 %s112, 1
        %s205 = smul.addr %s204, 16
        %s206 = scalar_lea.vmem [#allocation5], %s205
        %s207 = smul.u32 2, %s25
        %s208 = smul.u32 2, %s25
        %v209 = vld [vmem:[%s183] sm:$0xff]
        %v210 = vld [vmem:[%s1] sm:$0xff]
        %212 = vst [vmem:[#allocation1] ss:$2 sm:$0xff] %v209
        %v213 = vld.sshfl [vmem:[#allocation1] sm:$0xff pattern:$0x75316420]
        %v214 = vld.sshfl [vmem:[#allocation1 + $0x8] sm:$0xff pattern:$0x75316420]
        %217 = vrot.lane.b32.xlu0 %v213, 127
        %v218 = vpop.permute.xlu0 %217
        %219 = vrot.lane.b32.xlu0 %v214, 127
        %v220 = vpop.permute.xlu0 %219
        %v221 = vlaneseq
        %v222 = vand.u32 %v221, 127
        %vm223 = vcmp.lt.s32.totalorder %v222, 127
        %v224 = vsel %vm223, %v218, %v220
        %v225 = vsel %vm223, %v220, %v218
        %226 = vst [vmem:[#allocation1] ss:$2 sm:$0xff] %v209
        %v227 = vld.sshfl [vmem:[#allocation1] sm:$0xff pattern:$0x75316420]
        %v228 = vld.sshfl [vmem:[#allocation1 + $0x8] sm:$0xff pattern:$0x75316420]
        %231 = vrot.lane.b32.xlu0 %v227, 126
        %v232 = vpop.permute.xlu0 %231
        %233 = vrot.lane.b32.xlu0 %v228, 126
        %v234 = vpop.permute.xlu0 %233
        %vm235 = vcmp.lt.s32.totalorder %v222, 126
        %v236 = vsel %vm235, %v232, %v234
        %v237 = vsel %vm235, %v234, %v232
        %238 = vst [vmem:[#allocation1] ss:$2 sm:$0xff] %v209
        %v239 = vld.sshfl [vmem:[#allocation1] sm:$0xff pattern:$0x75316420]
        %v240 = vld.sshfl [vmem:[#allocation1 + $0x8] sm:$0xff pattern:$0x75316420]
        %v245 = vrot.slane %v224, 4
        %v246 = vrot.slane %v225, 4
        %vm249 = vcmask 1043456
        %v250 = vsel %vm249, %v239, %v245
        %v251 = vsel %vm249, %v240, %v246
        %252 = vst [vmem:[#allocation1] ss:$2 sm:$0xff] %v209
        %v253 = vld.sshfl [vmem:[#allocation1] sm:$0xff pattern:$0x75316420]
        %v254 = vld.sshfl [vmem:[#allocation1 + $0x8] sm:$0xff pattern:$0x75316420]
        %257 = vrot.lane.b32.xlu0 %v253, 110
        %v258 = vpop.permute.xlu0 %257
        %259 = vrot.lane.b32.xlu0 %v254, 110
        %v260 = vpop.permute.xlu0 %259
        %vm261 = vcmp.lt.s32.totalorder %v222, 110
        %v262 = vsel %vm261, %v258, %v260
        %v263 = vsel %vm261, %v260, %v258
        %264 = vst [vmem:[#allocation1] ss:$2 sm:$0xff] %v209
        %v265 = vld.sshfl [vmem:[#allocation1] sm:$0xff pattern:$0x75316420]
        %v266 = vld.sshfl [vmem:[#allocation1 + $0x8] sm:$0xff pattern:$0x75316420]
        %269 = vrot.lane.b32.xlu0 %v265, 109
        %v270 = vpop.permute.xlu0 %269
        %271 = vrot.lane.b32.xlu0 %v266, 109
        %v272 = vpop.permute.xlu0 %271
        %vm273 = vcmp.lt.s32.totalorder %v222, 109
        %v274 = vsel %vm273, %v270, %v272
        %v275 = vsel %vm273, %v272, %v270
        %276 = vst [vmem:[#allocation1] ss:$2 sm:$0xff] %v209
        %v277 = vld.sshfl [vmem:[#allocation1] sm:$0xff pattern:$0x75316420]
        %v278 = vld.sshfl [vmem:[#allocation1 + $0x8] sm:$0xff pattern:$0x75316420]
        %281 = vrot.lane.b32.xlu0 %v277, 108
        %v282 = vpop.permute.xlu0 %281
        %283 = vrot.lane.b32.xlu0 %v278, 108
        %v284 = vpop.permute.xlu0 %283
        %vm285 = vcmp.lt.s32.totalorder %v222, 108
        %v286 = vsel %vm285, %v282, %v284
        %v287 = vsel %vm285, %v284, %v282
        %v290 = vrot.slane %v274, 4
        %v291 = vrot.slane %v275, 4
        %v294 = vsel %vm249, %v262, %v290
        %v295 = vsel %vm249, %v263, %v291
        %297 = vrot.lane.b32.xlu0 %v210, 116
        %v298 = vpop.permute.xlu0 %297
        %vm299 = vcmask 97280
        %v300 = vsel %vm299, %v298, 0
        %v303 = vsel %vm249, %v286, 0
        %v306 = vsel %vm249, %v287, 0
        %308 = vmatpush.msra.mxu0 0.0
        %309 = vmatpush.msra.mxu0 0.0
        %310 = vmatpush.msra.mxu0 0.0
        %311 = vmatpush.msra.mxu0 0.0
        %312 = vmatpush.msra.mxu0 0.0
        %313 = vmatpush.msra.mxu0 0.0
        %314 = vmatpush.msra.mxu0 0.0
        %315 = vmatpush.msra.mxu0 0.0
        %316 = vmatpush.msra.mxu0 0.0
        %317 = vmatpush.msra.mxu0 0.0
        %318 = vmatpush.msra.mxu0 0.0
        %319 = vmatpush.msra.mxu0 0.0
        %320 = vmatpush.msra.mxu0 0.0
        %321 = vmatpush.msra.mxu0 0.0
        %322 = vmatpush.msra.mxu0 %v303
        %323 = vmatpush.msra.mxu0 %v294
        %324 = vmatmul.f32.gmra.mxu0 %v300
        %v325 = vpop.f32.mrf.mxu0
        %v326 = vadd.f32 0.0, %v325
        %327 = vdwg.mxu0
        %328 = vmatpush.msra.mxu0 0.0
        %329 = vmatpush.msra.mxu0 0.0
        %330 = vmatpush.msra.mxu0 0.0
        %331 = vmatpush.msra.mxu0 0.0
        %332 = vmatpush.msra.mxu0 0.0
        %333 = vmatpush.msra.mxu0 0.0
        %334 = vmatpush.msra.mxu0 0.0
        %335 = vmatpush.msra.mxu0 0.0
        %336 = vmatpush.msra.mxu0 0.0
        %337 = vmatpush.msra.mxu0 0.0
        %338 = vmatpush.msra.mxu0 0.0
        %339 = vmatpush.msra.mxu0 0.0
        %340 = vmatpush.msra.mxu0 0.0
        %341 = vmatpush.msra.mxu0 0.0
        %342 = vmatpush.msra.mxu0 %v306
        %343 = vmatpush.msra.mxu0 %v295
        %344 = vmatmul.f32.gmra.mxu0 %v300
        %v345 = vpop.f32.mrf.mxu0
        %v346 = vadd.f32 0.0, %v345
        %347 = vdwg.mxu0
        %v348 = vsel %vm299, %v210, 0
        %v351 = vsel %vm249, %v236, 0
        %v354 = vsel %vm249, %v237, 0
        %356 = vmatpush.msra.mxu0 0.0
        %357 = vmatpush.msra.mxu0 0.0
        %358 = vmatpush.msra.mxu0 0.0
        %359 = vmatpush.msra.mxu0 0.0
        %360 = vmatpush.msra.mxu0 0.0
        %361 = vmatpush.msra.mxu0 0.0
        %362 = vmatpush.msra.mxu0 0.0
        %363 = vmatpush.msra.mxu0 0.0
        %364 = vmatpush.msra.mxu0 0.0
        %365 = vmatpush.msra.mxu0 0.0
        %366 = vmatpush.msra.mxu0 0.0
        %367 = vmatpush.msra.mxu0 0.0
        %368 = vmatpush.msra.mxu0 0.0
        %369 = vmatpush.msra.mxu0 0.0
        %370 = vmatpush.msra.mxu0 %v351
        %371 = vmatpush.msra.mxu0 %v250
        %372 = vmatmul.f32.gmra.mxu0 %v348
        %v373 = vpop.f32.mrf.mxu0
        %v374 = vadd.f32 %v326, %v373
        %375 = vdwg.mxu0
        %376 = vmatpush.msra.mxu0 0.0
        %377 = vmatpush.msra.mxu0 0.0
        %378 = vmatpush.msra.mxu0 0.0
        %379 = vmatpush.msra.mxu0 0.0
        %380 = vmatpush.msra.mxu0 0.0
        %381 = vmatpush.msra.mxu0 0.0
        %382 = vmatpush.msra.mxu0 0.0
        %383 = vmatpush.msra.mxu0 0.0
        %384 = vmatpush.msra.mxu0 0.0
        %385 = vmatpush.msra.mxu0 0.0
        %386 = vmatpush.msra.mxu0 0.0
        %387 = vmatpush.msra.mxu0 0.0
        %388 = vmatpush.msra.mxu0 0.0
        %389 = vmatpush.msra.mxu0 0.0
        %390 = vmatpush.msra.mxu0 %v354
        %391 = vmatpush.msra.mxu0 %v251
        %392 = vmatmul.f32.gmra.mxu0 %v348
        %v393 = vpop.f32.mrf.mxu0
        %v394 = vadd.f32 %v346, %v393
        %395 = vdwg.mxu0
        %396 = vst [vmem:[#allocation1] ss:$2 sm:$0xff] %v209
        %v397 = vld.sshfl [vmem:[#allocation1] sm:$0xff pattern:$0x75316420]
        %v398 = vld.sshfl [vmem:[#allocation1 + $0x8] sm:$0xff pattern:$0x75316420]
        %401 = vrot.lane.b32.xlu0 %v397, 92
        %v402 = vpop.permute.xlu0 %401
        %403 = vrot.lane.b32.xlu0 %v398, 92
        %v404 = vpop.permute.xlu0 %403
        %vm405 = vcmp.lt.s32.totalorder %v222, 92
        %v406 = vsel %vm405, %v402, %v404
        %v407 = vsel %vm405, %v404, %v402
        %408 = vst [vmem:[#allocation1] ss:$2 sm:$0xff] %v209
        %v409 = vld.sshfl [vmem:[#allocation1] sm:$0xff pattern:$0x75316420]
        %v410 = vld.sshfl [vmem:[#allocation1 + $0x8] sm:$0xff pattern:$0x75316420]
        %413 = vrot.lane.b32.xlu0 %v409, 91
        %v414 = vpop.permute.xlu0 %413
        %415 = vrot.lane.b32.xlu0 %v410, 91
        %v416 = vpop.permute.xlu0 %415
        %vm417 = vcmp.lt.s32.totalorder %v222, 91
        %v418 = vsel %vm417, %v414, %v416
        %v419 = vsel %vm417, %v416, %v414
        %420 = vst [vmem:[#allocation1] ss:$2 sm:$0xff] %v209
        %v421 = vld.sshfl [vmem:[#allocation1] sm:$0xff pattern:$0x75316420]
        %v422 = vld.sshfl [vmem:[#allocation1 + $0x8] sm:$0xff pattern:$0x75316420]
        %425 = vrot.lane.b32.xlu0 %v421, 90
        %v426 = vpop.permute.xlu0 %425
        %427 = vrot.lane.b32.xlu0 %v422, 90
        %v428 = vpop.permute.xlu0 %427
        %vm429 = vcmp.lt.s32.totalorder %v222, 90
        %v430 = vsel %vm429, %v426, %v428
        %v431 = vsel %vm429, %v428, %v426
        %v434 = vrot.slane %v418, 4
        %v435 = vrot.slane %v419, 4
        %v438 = vsel %vm249, %v406, %v434
        %v439 = vsel %vm249, %v407, %v435
        %440 = vrot.lane.b32.xlu0 %v210, 104
        %v441 = vpop.permute.xlu0 %440
        %v442 = vsel %vm299, %v441, 0
        %v445 = vsel %vm249, %v430, 0
        %v448 = vsel %vm249, %v431, 0
        %450 = vmatpush.msra.mxu0 0.0
        %451 = vmatpush.msra.mxu0 0.0
        %452 = vmatpush.msra.mxu0 0.0
        %453 = vmatpush.msra.mxu0 0.0
        %454 = vmatpush.msra.mxu0 0.0
        %455 = vmatpush.msra.mxu0 0.0
        %456 = vmatpush.msra.mxu0 0.0
        %457 = vmatpush.msra.mxu0 0.0
        %458 = vmatpush.msra.mxu0 0.0
        %459 = vmatpush.msra.mxu0 0.0
        %460 = vmatpush.msra.mxu0 0.0
        %461 = vmatpush.msra.mxu0 0.0
        %462 = vmatpush.msra.mxu0 0.0
        %463 = vmatpush.msra.mxu0 0.0
        %464 = vmatpush.msra.mxu0 %v445
        %465 = vmatpush.msra.mxu0 %v438
        %466 = vmatmul.f32.gmra.mxu0 %v442
        %v467 = vpop.f32.mrf.mxu0
        %v468 = vadd.f32 0.0, %v467
        %469 = vdwg.mxu0
        %470 = vmatpush.msra.mxu0 0.0
        %471 = vmatpush.msra.mxu0 0.0
        %472 = vmatpush.msra.mxu0 0.0
        %473 = vmatpush.msra.mxu0 0.0
        %474 = vmatpush.msra.mxu0 0.0
        %475 = vmatpush.msra.mxu0 0.0
        %476 = vmatpush.msra.mxu0 0.0
        %477 = vmatpush.msra.mxu0 0.0
        %478 = vmatpush.msra.mxu0 0.0
        %479 = vmatpush.msra.mxu0 0.0
        %480 = vmatpush.msra.mxu0 0.0
        %481 = vmatpush.msra.mxu0 0.0
        %482 = vmatpush.msra.mxu0 0.0
        %483 = vmatpush.msra.mxu0 0.0
        %484 = vmatpush.msra.mxu0 %v448
        %485 = vmatpush.msra.mxu0 %v439
        %486 = vmatmul.f32.gmra.mxu0 %v442
        %v487 = vpop.f32.mrf.mxu0
        %v488 = vadd.f32 0.0, %v487
        %489 = vdwg.mxu0
        %v490 = vadd.f32 %v374, %v468
        %v491 = vadd.f32 %v394, %v488
        %v492 = vld [vmem:[%s2] sm:$0xff]
        %494 = vset.pattern.permute.xlu0 0
        %495 = vperm.xlu0 %494, %v492
        %v496 = vpop.permute.xlu0 %495
        %v498 = vadd.f32 %v490, %v496
        %v499 = vadd.f32 %v491, %v496
        %500 = vst [vmem:[%s206] sm:$0xff] %v498
        %501 = vst [vmem:[%s206 + $0x8] sm:$0xff] %v499
        %s502 = sand.u32 %s112, 1
        %s503 = scalar_lea.sflag [#allocation4], %s502
        %s504 = sand.u32 %s112, 1
        %s505 = smul.addr %s504, 16
        %s506 = scalar_lea.vmem [#allocation5], %s505
        // Predicated region
        $region37: #{tpu_custom_call.1} parent=31 // pred_check
          %p507 = pneg %p122
        $region38: #{tpu_custom_call.1} parent=31 // pred_check_branch
          %509 = sbr.rel (%p507) target = $region40
        $region39: #{tpu_custom_call.1} parent=31 // pred_region
          %s510 = smul.u32 2, %s25
          %512 = vsyncadd %s503, 0
          %s513 = smul.addr %s24, 4
          %s514 = sadd.s32 %s510, %s513
          %s515 = smul.addr %s514, 8
          %s516 = scalar_lea.hbm %s3, %s515
          %s518 = sshll.u32 %s506, 4
          %s519 = int_to_ptr.vmem [resolvable:$true] %s518
          %s520 = sshll.u32 %s516, 4
          %s521 = int_to_ptr.hbm [resolvable:$true] %s520
          %523 = dma.vmem_to_hbm [thread:$0]  %s519, 256, %s521, %s503
        $region40: #{tpu_custom_call.1} parent=31 // pred_fallthru
          _
      $region32: #{tpu_custom_call.1} parent=5 // pred_fallthru
        _
      %p524 = scmp.le.s32.totalorder 2, %s15
      // Predicated region
      $region41: #{tpu_custom_call.1} parent=5 // pred_check
        %p525 = pneg %p524
      $region42: #{tpu_custom_call.1} parent=5 // pred_check_branch
        %527 = sbr.rel (%p525) target = $region44
      $region43: #{tpu_custom_call.1} parent=5 // pred_region
        %s528 = ssub.s32 %s15, 2
        // Predicated region
        $region45: #{tpu_custom_call.1} parent=43 // pred_check
          %p529 = pneg %p128
        $region46: #{tpu_custom_call.1} parent=43 // pred_check_branch
          %531 = sbr.rel (%p529) target = $region48
        $region47: #{tpu_custom_call.1} parent=43 // pred_region
          %s532 = sand.u32 %s113, 1
          %s533 = scalar_lea.sflag [#allocation4], %s532
          %s534 = sand.u32 %s113, 1
          %s535 = smul.addr %s534, 16
          %s536 = scalar_lea.vmem [#allocation5], %s535
          %538 = dma.done %s533, 256
        $region48: #{tpu_custom_call.1} parent=43 // pred_fallthru
          _
      $region44: #{tpu_custom_call.1} parent=5 // pred_fallthru
        _
    $region6: #{tpu_custom_call.1} parent=1 // loop_footer
      %s19 = sadd.s32 1, %s15
    $region7: #{tpu_custom_call.1} parent=1 // loop_footer_branch
      %14 = sbr.rel target = $region3
    $region8: #{tpu_custom_call.1} parent=1 // loop_exit
      _
    %539 = vsyncpa [#allocation3], 1
    %s540 = scalar_lea.sflag [#allocation3], 1
    %541 = vsyncpa %s540, 1
    %542 = vsyncpa [#allocation4], 1
    %s543 = scalar_lea.sflag [#allocation4], 1
    %544 = vsyncpa %s543, 1

</llo_original>
